<compile_context>
chip_gen: v7x
topology: tpu7x:2x2x1
jax: 0.10.0
libtpu: 0.0.40
codegen_flags: <defaults>
</compile_context>

<pallas_src>
import jax
import jax.numpy as jnp
from jax.experimental import pallas as pl
from jax.experimental.pallas import tpu as pltpu
import numpy as np


def attn_kernel(x_ref, wfc_ref, bfc_ref, wprojr_ref, out_ref):
    tb, F, E = x_ref.shape
    A = wfc_ref.shape[1]

    # Load the x tile once and promote to f32 once (reused by matmul + weighted sum).
    xf = x_ref[...].astype(jnp.float32)                           # (tb, F, E)

    # fc + relu as one tall-M matmul: (tb*F, E) @ (E, A).
    scores = jnp.dot(xf.reshape(tb * F, E), wfc_ref[...],
                     preferred_element_type=jnp.float32)          # (tb*F, A)
    scores = jnp.maximum(scores + bfc_ref[...], 0.0)

    # projection.weight as a lane row: multiply + lane reduce instead of an N=1 matmul.
    scores3 = scores.reshape(tb, F, A)                            # (tb, F, A)
    logits = jnp.sum(scores3 * wprojr_ref[...], axis=-1)          # (tb, F), fields on lanes

    # Numerically stable softmax over the field axis (lane axis of a (tb, F) tile).
    m = jnp.max(logits, axis=-1, keepdims=True)                   # (tb, 1)
    e = jnp.exp(logits - m)                                       # (tb, F)  -> EUP
    gate = e / jnp.sum(e, axis=-1, keepdims=True)                 # (tb, F)

    # Weighted sum over fields -> (tb, E).
    out = jnp.sum(gate[:, :, None] * xf, axis=1)
    out_ref[...] = out.astype(out_ref.dtype)

    # NOTE: dropout is identity in eval mode; nothing to emit here.


def attention_layer(x, w_fc, b_fc, w_proj, *, tile_b=512):
    """x: (B, F, E) -> (B, E). Eval-mode forward of AttentionLayer."""
    B, F, E = x.shape
    A = w_fc.shape[1]
    w_proj_row = w_proj.reshape(1, A)
    b_fc = b_fc.reshape(1, A)

    # Pick the batch tile: as many rows per grid step as comfortably fit in VMEM
    # (x tile is double-buffered by the BlockSpec pipeline). Keep it a multiple
    # of 8 sublanes and zero-pad B so the grid divides evenly. Zero rows are
    # numerically safe (softmax of constants * zero x -> zero output) and are
    # dropped after the call.
    bytes_per_row = F * E * max(x.dtype.itemsize, 4)
    cap = max(8, (4 << 20) // max(bytes_per_row, 1))              # ~4 MiB x-tile budget
    tb = max(8, min(tile_b, cap, B if B >= 8 else 8))
    tb = ((tb + 7) // 8) * 8
    Bp = ((B + tb - 1) // tb) * tb
    xp = x if Bp == B else jnp.pad(x, ((0, Bp - B), (0, 0), (0, 0)))

    grid = (Bp // tb,)

    itemsize = xp.dtype.itemsize
    cost = pl.CostEstimate(
        flops=2 * Bp * F * E * A + 2 * Bp * F * A + 2 * Bp * F * E,
        transcendentals=Bp * F,
        bytes_accessed=Bp * F * E * itemsize + Bp * E * itemsize
        + (E * A + 2 * A) * 4,
    )

    out = pl.pallas_call(
        attn_kernel,
        out_shape=jax.ShapeDtypeStruct((Bp, E), x.dtype),
        grid_spec=pltpu.PrefetchScalarGridSpec(
            num_scalar_prefetch=0,
            grid=grid,
            in_specs=[
                pl.BlockSpec((tb, F, E), lambda b: (b, 0, 0)),   # batched x tile
                pl.BlockSpec((E, A), lambda b: (0, 0)),          # fc weight (VMEM-resident)
                pl.BlockSpec((1, A), lambda b: (0, 0)),          # fc bias   (VMEM-resident)
                pl.BlockSpec((1, A), lambda b: (0, 0)),          # projection row (resident)
            ],
            out_specs=pl.BlockSpec((tb, E), lambda b: (b, 0)),   # (B, E) written directly
        ),
        compiler_params=pltpu.CompilerParams(
            dimension_semantics=("parallel",)),
        cost_estimate=cost,
    )(xp, w_fc, b_fc, w_proj_row)

    return out[:B] if Bp != B else out


def reference(x, w_fc, b_fc, w_proj):
    scores = jnp.maximum(jnp.einsum("bfe,ea->bfa", x, w_fc) + b_fc.reshape(1, 1, -1), 0.0)
    logits = jnp.einsum("bfa,ao->bfo", scores, w_proj.reshape(-1, 1))   # (B, F, 1)
    gate = jax.nn.softmax(logits, axis=1)
    return jnp.sum(gate * x, axis=1)


if __name__ == "__main__":
    # Small shapes consistent with the module: batch, num_fields, embed_dim, attn_size.
    B, F, E, A = 2, 8, 32, 16

    key = jax.random.PRNGKey(0)
    kx, kw1, kb1, kw2 = jax.random.split(key, 4)

    x = jax.random.normal(kx, (B, F, E), dtype=jnp.float32)

    # Init mimicking torch.nn.Linear defaults: U(-1/sqrt(fan_in), 1/sqrt(fan_in)).
    lim1 = 1.0 / np.sqrt(E)
    w_fc = jax.random.uniform(kw1, (E, A), jnp.float32, -lim1, lim1)    # fc.weight^T
    b_fc = jax.random.uniform(kb1, (1, A), jnp.float32, -lim1, lim1)    # fc.bias
    lim2 = 1.0 / np.sqrt(A)
    w_proj = jax.random.uniform(kw2, (A, 1), jnp.float32, -lim2, lim2)  # projection.weight^T

    out = attention_layer(x, w_fc, b_fc, w_proj)
    out = jax.block_until_ready(out)

    ref = reference(x, w_fc, b_fc, w_proj)
    np.testing.assert_allclose(np.asarray(out), np.asarray(ref), rtol=1e-5, atol=1e-5)
    assert out.shape == (B, E)

    print("KERNEL_OK")
</pallas_src>

<mosaic_0001>
module attributes {stable_mosaic.version = 11 : i64} {
  func.func @attn_kernel(%arg0: i32, %arg1: memref<8x8x32xf32, #tpu.memory_space<vmem>>, %arg2: memref<32x16xf32, #tpu.memory_space<vmem>>, %arg3: memref<1x16xf32, #tpu.memory_space<vmem>>, %arg4: memref<1x16xf32, #tpu.memory_space<vmem>>, %arg5: memref<8x32xf32, #tpu.memory_space<vmem>>) attributes {dimension_semantics = [#tpu.dimension_semantics<parallel>], iteration_bounds = array<i64: 1>, scalar_prefetch = 0 : i64, scratch_operands = 0 : i64, tpu.core_type = #tpu.core_type<tc>, window_params = [{transform_indices = @transform_0, window_bounds = array<i64: 8, 8, 32>}, {pipeline_mode = #tpu.pipeline_mode<synchronous>, transform_indices = @transform_1, window_bounds = array<i64: 32, 16>}, {pipeline_mode = #tpu.pipeline_mode<synchronous>, transform_indices = @transform_2, window_bounds = array<i64: 1, 16>}, {pipeline_mode = #tpu.pipeline_mode<synchronous>, transform_indices = @transform_3, window_bounds = array<i64: 1, 16>}, {transform_indices = @transform_4, window_bounds = array<i64: 8, 32>}]} {
    %c0 = arith.constant 0 : index
    %c0_0 = arith.constant 0 : index
    %c0_1 = arith.constant 0 : index
    %0 = vector.load %arg1[%c0, %c0_0, %c0_1] : memref<8x8x32xf32, #tpu.memory_space<vmem>>, vector<8x8x32xf32>
    %1 = vector.shape_cast %0 : vector<8x8x32xf32> to vector<64x32xf32>
    %c0_2 = arith.constant 0 : index
    %c0_3 = arith.constant 0 : index
    %2 = vector.load %arg2[%c0_2, %c0_3] : memref<32x16xf32, #tpu.memory_space<vmem>>, vector<32x16xf32>
    %cst = arith.constant dense<0.000000e+00> : vector<64x16xf32>
    %3 = tpu.matmul %1, %2, %cst {dimension_numbers = #tpu.dot_dimension_numbers<[1], [0], [0], [1], [0, 0, 1, 1], [], []>} : vector<64x32xf32>, vector<32x16xf32>, vector<64x16xf32> -> vector<64x16xf32>
    %c0_4 = arith.constant 0 : index
    %c0_5 = arith.constant 0 : index
    %4 = vector.load %arg3[%c0_4, %c0_5] : memref<1x16xf32, #tpu.memory_space<vmem>>, vector<1x16xf32>
    %5 = vector.broadcast %4 : vector<1x16xf32> to vector<64x16xf32>
    %6 = arith.addf %3, %5 : vector<64x16xf32>
    %cst_6 = arith.constant 0.000000e+00 : f32
    %7 = vector.broadcast %cst_6 : f32 to vector<64x16xf32>
    %8 = arith.maximumf %6, %7 : vector<64x16xf32>
    %9 = vector.shape_cast %8 : vector<64x16xf32> to vector<8x8x16xf32>
    %c0_7 = arith.constant 0 : index
    %c0_8 = arith.constant 0 : index
    %10 = vector.load %arg4[%c0_7, %c0_8] : memref<1x16xf32, #tpu.memory_space<vmem>>, vector<1x16xf32>
    %11 = vector.shape_cast %10 : vector<1x16xf32> to vector<1x1x16xf32>
    %12 = vector.broadcast %11 : vector<1x1x16xf32> to vector<8x8x16xf32>
    %13 = arith.mulf %9, %12 : vector<8x8x16xf32>
    %cst_9 = arith.constant dense<0.000000e+00> : vector<8x8xf32>
    %14 = vector.multi_reduction <add>, %13, %cst_9 [2] : vector<8x8x16xf32> to vector<8x8xf32>
    %cst_10 = arith.constant dense<0xFF800000> : vector<8xf32>
    %15 = vector.multi_reduction <maximumf>, %14, %cst_10 [1] : vector<8x8xf32> to vector<8xf32>
    %16 = vector.shape_cast %15 : vector<8xf32> to vector<8x1xf32>
    %17 = vector.broadcast %16 : vector<8x1xf32> to vector<8x8xf32>
    %18 = arith.subf %14, %17 : vector<8x8xf32>
    %19 = math.exp %18 : vector<8x8xf32>
    %cst_11 = arith.constant dense<0.000000e+00> : vector<8xf32>
    %20 = vector.multi_reduction <add>, %19, %cst_11 [1] : vector<8x8xf32> to vector<8xf32>
    %21 = vector.shape_cast %20 : vector<8xf32> to vector<8x1xf32>
    %22 = vector.broadcast %21 : vector<8x1xf32> to vector<8x8xf32>
    %23 = arith.divf %19, %22 : vector<8x8xf32>
    %24 = vector.shape_cast %23 : vector<8x8xf32> to vector<8x8x1xf32>
    %25 = vector.broadcast %24 : vector<8x8x1xf32> to vector<8x8x32xf32>
    %26 = arith.mulf %25, %0 : vector<8x8x32xf32>
    %cst_12 = arith.constant dense<0.000000e+00> : vector<8x32xf32>
    %27 = vector.multi_reduction <add>, %26, %cst_12 [1] : vector<8x8x32xf32> to vector<8x32xf32>
    %c0_13 = arith.constant 0 : index
    %c0_14 = arith.constant 0 : index
    %28 = vector.load %arg5[%c0_13, %c0_14] : memref<8x32xf32, #tpu.memory_space<vmem>>, vector<8x32xf32>
    tpu.vector_store %arg5[%c0_13, %c0_14], %27 {strides = array<i32>} : memref<8x32xf32, #tpu.memory_space<vmem>>, vector<8x32xf32>,
    return
  }
  func.func @transform_0(%arg0: i32) -> (i32, i32, i32) {
    %c0_i32 = arith.constant 0 : i32
    %c0_i32_0 = arith.constant 0 : i32
    %c0_i32_1 = arith.constant 0 : i32
    return %arg0, %c0_i32, %c0_i32_0 : i32, i32, i32
  }
  func.func @transform_1(%arg0: i32) -> (i32, i32) {
    %c0_i32 = arith.constant 0 : i32
    %c0_i32_0 = arith.constant 0 : i32
    %c0_i32_1 = arith.constant 0 : i32
    return %c0_i32, %c0_i32_0 : i32, i32
  }
  func.func @transform_2(%arg0: i32) -> (i32, i32) {
    %c0_i32 = arith.constant 0 : i32
    %c0_i32_0 = arith.constant 0 : i32
    %c0_i32_1 = arith.constant 0 : i32
    return %c0_i32, %c0_i32_0 : i32, i32
  }
  func.func @transform_3(%arg0: i32) -> (i32, i32) {
    %c0_i32 = arith.constant 0 : i32
    %c0_i32_0 = arith.constant 0 : i32
    %c0_i32_1 = arith.constant 0 : i32
    return %c0_i32, %c0_i32_0 : i32, i32
  }
  func.func @transform_4(%arg0: i32) -> (i32, i32) {
    %c0_i32 = arith.constant 0 : i32
    %c0_i32_0 = arith.constant 0 : i32
    return %arg0, %c0_i32 : i32, i32
  }
}

</mosaic_0001>

<llo_original>
// kernel: tpu_custom_call.1
$region0: #{tpu_custom_call.1}
  #allocation0 [shape = 'u32[]', space=smem, size = 0x4, offset = 0x4, fixed_abs, tag = 'smem constant byte address 0x4 - core index']
  #allocation1 [shape = 'u32[144,128]{1,0:T(1,128)}', space=vmem, size = 0x12000, scoped, tag = 'internal scratch']
  %s0 = inlined_call_operand.hbm [shape: f32[8,8,32], index: 0, kind: input, shape index: {}]
  %s1 = inlined_call_operand.vmem [shape: f32[32,16], index: 1, kind: input, shape index: {}]
  %s2 = inlined_call_operand.vmem [shape: f32[1,16], index: 2, kind: input, shape index: {}]
  %s3 = inlined_call_operand.vmem [shape: f32[1,16], index: 3, kind: input, shape index: {}]
  %s4 = inlined_call_operand.hbm [shape: f32[8,32], index: 4, kind: output, shape index: {}]
  %s5 = sld [smem:[#allocation0]]
  $region30: #{tpu_custom_call.1} parent=0
    _
  %s7 = ssub.s32 1, %s5
  %s8 = scalar_select 0, %s7, %s5
  $region1: #{tpu_custom_call.1} parent=0
    #allocation2 [shape = 'u8[32768]{0}', space=vmem, size = 0x8000, scoped, tag = 'input window, operand 0, single buffered']
    #allocation3 [shape = 's32[1]{0}', space=sflag, size = 0x4, scoped, tag = 'scoped memory for tpu_custom_call.1']
    #allocation4 [shape = 's32[1]{0}', space=sflag, size = 0x4, scoped, tag = 'scoped memory for tpu_custom_call.1']
    #allocation5 [shape = 'u8[4096]{0}', space=vmem, size = 0x1000, scoped, tag = 'output window, operand 0, single buffered']
    %9 = vsyncpa [#allocation3], 0
    %10 = vsyncpa [#allocation4], 0
    // Predicated region
    $region2: #{tpu_custom_call.1} parent=1 // pred_check
      _
    $region3: #{tpu_custom_call.1} parent=1 // pred_check_branch
      %12 = sbr.rel (0) target = $region5
    $region4: #{tpu_custom_call.1} parent=1 // pred_region
      %s14 = ssub.s32 1024, 1024
      %15 = vsyncadd [#allocation3], %s14
      %s16 = sshll.u32 [#allocation2], 4
      %s17 = int_to_ptr.vmem [resolvable:$true] %s16
      %22 = dma.hbm_to_vmem [thread:$0]  %s0, 1024, %s17, [#allocation3], 128, 128, 8
    $region5: #{tpu_custom_call.1} parent=1 // pred_fallthru
      _
    // Predicated region
    $region6: #{tpu_custom_call.1} parent=1 // pred_check
      _
    $region7: #{tpu_custom_call.1} parent=1 // pred_check_branch
      %24 = sbr.rel (0) target = $region9
    $region8: #{tpu_custom_call.1} parent=1 // pred_region
      _
    $region9: #{tpu_custom_call.1} parent=1 // pred_fallthru
      _
    // Predicated region
    $region10: #{tpu_custom_call.1} parent=1 // pred_check
      _
    $region11: #{tpu_custom_call.1} parent=1 // pred_check_branch
      %26 = sbr.rel (0) target = $region13
    $region12: #{tpu_custom_call.1} parent=1 // pred_region
      _
    $region13: #{tpu_custom_call.1} parent=1 // pred_fallthru
      _
    // Predicated region
    $region14: #{tpu_custom_call.1} parent=1 // pred_check
      _
    $region15: #{tpu_custom_call.1} parent=1 // pred_check_branch
      %28 = sbr.rel (0) target = $region17
    $region16: #{tpu_custom_call.1} parent=1 // pred_region
      _
    $region17: #{tpu_custom_call.1} parent=1 // pred_fallthru
      _
    // Predicated region
    $region18: #{tpu_custom_call.1} parent=1 // pred_check
      _
    $region19: #{tpu_custom_call.1} parent=1 // pred_check_branch
      %30 = sbr.rel (0) target = $region21
    $region20: #{tpu_custom_call.1} parent=1 // pred_region
      %31 = dma.done [#allocation3], 1024
    $region21: #{tpu_custom_call.1} parent=1 // pred_fallthru
      _
    %v32 = vld [vmem:[#allocation2] sm:$0xff]
    %v33 = vld [vmem:[#allocation2 + $0x8] sm:$0xff]
    %v34 = vld [vmem:[#allocation2 + $0x10] sm:$0xff]
    %v35 = vld [vmem:[#allocation2 + $0x18] sm:$0xff]
    %v36 = vld [vmem:[#allocation2 + $0x20] sm:$0xff]
    %v37 = vld [vmem:[#allocation2 + $0x28] sm:$0xff]
    %v38 = vld [vmem:[#allocation2 + $0x30] sm:$0xff]
    %v39 = vld [vmem:[#allocation2 + $0x38] sm:$0xff]
    %v40 = vld [vmem:[%s1] sm:$0xff]
    %v41 = vld [vmem:[%s1 + $0x8] sm:$0xff]
    %v42 = vld [vmem:[%s1 + $0x10] sm:$0xff]
    %v43 = vld [vmem:[%s1 + $0x18] sm:$0xff]
    %v44 = vld [vmem:[%s2] sm:$0x1]
    %v46 = vlaneseq
    %v47 = vshrl.u32 %v46, 7
    %v48 = vsub.s32 0, %v47
    %v49 = vrot.slane %v44, %v48
    %vm51 = vcmask 261120
    %v53 = vsel %vm51, %v32, 0
    %v56 = vsel %vm51, %v33, 0
    %v59 = vsel %vm51, %v34, 0
    %v62 = vsel %vm51, %v35, 0
    %v65 = vsel %vm51, %v36, 0
    %v68 = vsel %vm51, %v37, 0
    %v71 = vsel %vm51, %v38, 0
    %v74 = vsel %vm51, %v39, 0
    %76 = vmatprep.subr.mxu0 0.0
    %77 = vmatpush1.msra.mxu0 %v40
    %78 = vmatprep.subr.mxu0 0.0
    %79 = vmatpush1.msra.mxu0 %v41
    %80 = vmatprep.subr.mxu0 0.0
    %81 = vmatpush1.msra.mxu0 %v42
    %82 = vmatprep.subr.mxu0 0.0
    %83 = vmatpush1.msra.mxu0 %v43
    %84 = vmatprep.subr.mxu0 0.0
    %85 = vmatpush1.msra.mxu0 0.0
    %86 = vmatprep.subr.mxu0 0.0
    %87 = vmatpush1.msra.mxu0 0.0
    %88 = vmatprep.subr.mxu0 0.0
    %89 = vmatpush1.msra.mxu0 0.0
    %90 = vmatprep.subr.mxu0 0.0
    %91 = vmatpush1.msra.mxu0 0.0
    %92 = vmatprep.subr.mxu0 0.0
    %93 = vmatpush1.msra.mxu0 0.0
    %94 = vmatprep.subr.mxu0 0.0
    %95 = vmatpush1.msra.mxu0 0.0
    %96 = vmatprep.subr.mxu0 0.0
    %97 = vmatpush1.msra.mxu0 0.0
    %98 = vmatprep.subr.mxu0 0.0
    %99 = vmatpush1.msra.mxu0 0.0
    %100 = vmatprep.subr.mxu0 0.0
    %101 = vmatpush1.msra.mxu0 0.0
    %102 = vmatprep.subr.mxu0 0.0
    %103 = vmatpush1.msra.mxu0 0.0
    %104 = vmatprep.subr.mxu0 0.0
    %105 = vmatpush1.msra.mxu0 0.0
    %106 = vmatprep.subr.mxu0 0.0
    %107 = vmatpush1.msra.mxu0 0.0
    %108 = vmatprep.subr.mxu0 0.0
    %109 = vmatpush1.msra.mxu0 0.0
    %110 = vmatprep.subr.mxu0 0.0
    %111 = vmatpush1.msra.mxu0 0.0
    %112 = vmatprep.subr.mxu0 0.0
    %113 = vmatpush1.msra.mxu0 0.0
    %114 = vmatprep.subr.mxu0 0.0
    %115 = vmatpush1.msra.mxu0 0.0
    %116 = vmatprep.subr.mxu0 0.0
    %117 = vmatpush1.msra.mxu0 0.0
    %118 = vmatprep.subr.mxu0 0.0
    %119 = vmatpush1.msra.mxu0 0.0
    %120 = vmatprep.subr.mxu0 0.0
    %121 = vmatpush1.msra.mxu0 0.0
    %122 = vmatprep.subr.mxu0 0.0
    %123 = vmatpush1.msra.mxu0 0.0
    %124 = vmatprep.subr.mxu0 0.0
    %125 = vmatpush1.msra.mxu0 0.0
    %126 = vmatprep.subr.mxu0 0.0
    %127 = vmatpush1.msra.mxu0 0.0
    %128 = vmatprep.subr.mxu0 0.0
    %129 = vmatpush1.msra.mxu0 0.0
    %130 = vmatprep.subr.mxu0 0.0
    %131 = vmatpush1.msra.mxu0 0.0
    %132 = vmatprep.subr.mxu0 0.0
    %133 = vmatpush1.msra.mxu0 0.0
    %134 = vmatprep.subr.mxu0 0.0
    %135 = vmatpush1.msra.mxu0 0.0
    %136 = vmatprep.subr.mxu0 0.0
    %137 = vmatpush1.msra.mxu0 0.0
    %138 = vmatprep.subr.mxu0 0.0
    %139 = vmatpush1.msra.mxu0 0.0
    %140 = vmatprep.mubr.f32.mxu0 0.0
    %141 = vmatmul.mubr.f32.gmra.mrb[0].mxu0 %v53
    %v142 = vpop.f32.mrb[0].mxu0
    %v143 = vadd.f32 %v49, %v142
    %v144 = vpop.f32.mrb[0].mxu0
    %145 = vmatprep.mubr.f32.mxu0 0.0
    %146 = vmatmul.mubr.f32.gmra.mrb[0].mxu0 %v56
    %v147 = vpop.f32.mrb[0].mxu0
    %v148 = vadd.f32 %v49, %v147
    %v149 = vpop.f32.mrb[0].mxu0
    %150 = vmatprep.mubr.f32.mxu0 0.0
    %151 = vmatmul.mubr.f32.gmra.mrb[0].mxu0 %v59
    %v152 = vpop.f32.mrb[0].mxu0
    %v153 = vadd.f32 %v49, %v152
    %v154 = vpop.f32.mrb[0].mxu0
    %155 = vmatprep.mubr.f32.mxu0 0.0
    %156 = vmatmul.mubr.f32.gmra.mrb[0].mxu0 %v62
    %v157 = vpop.f32.mrb[0].mxu0
    %v158 = vadd.f32 %v49, %v157
    %v159 = vpop.f32.mrb[0].mxu0
    %160 = vmatprep.mubr.f32.mxu0 0.0
    %161 = vmatmul.mubr.f32.gmra.mrb[0].mxu0 %v65
    %v162 = vpop.f32.mrb[0].mxu0
    %v163 = vadd.f32 %v49, %v162
    %v164 = vpop.f32.mrb[0].mxu0
    %165 = vmatprep.mubr.f32.mxu0 0.0
    %166 = vmatmul.mubr.f32.gmra.mrb[0].mxu0 %v68
    %v167 = vpop.f32.mrb[0].mxu0
    %v168 = vadd.f32 %v49, %v167
    %v169 = vpop.f32.mrb[0].mxu0
    %170 = vmatprep.mubr.f32.mxu0 0.0
    %171 = vmatmul.mubr.f32.gmra.mrb[0].mxu0 %v71
    %v172 = vpop.f32.mrb[0].mxu0
    %v173 = vadd.f32 %v49, %v172
    %v174 = vpop.f32.mrb[0].mxu0
    %175 = vmatprep.mubr.f32.mxu0 0.0
    %176 = vmatmul.mubr.f32.gmra.mrb[0].mxu0 %v74
    %v177 = vpop.f32.mrb[0].mxu0
    %v178 = vadd.f32 %v49, %v177
    %v179 = vpop.f32.mrb[0].mxu0
    %180 = vdwg.mxu0
    %v181 = vmax.f32 %v143, 0.0
    %v182 = vmax.f32 %v148, 0.0
    %v183 = vmax.f32 %v153, 0.0
    %v184 = vmax.f32 %v158, 0.0
    %v185 = vmax.f32 %v163, 0.0
    %v186 = vmax.f32 %v168, 0.0
    %v187 = vmax.f32 %v173, 0.0
    %v188 = vmax.f32 %v178, 0.0
    %v189 = vld [vmem:[%s3] sm:$0x1]
    %v191 = vlaneseq
    %v192 = vshrl.u32 %v191, 7
    %v193 = vsub.s32 0, %v192
    %v194 = vrot.slane %v189, %v193
    %v196 = vmul.f32 %v181, %v194
    %v197 = vmul.f32 %v182, %v194
    %v198 = vmul.f32 %v183, %v194
    %v199 = vmul.f32 %v184, %v194
    %v200 = vmul.f32 %v185, %v194
    %v201 = vmul.f32 %v186, %v194
    %v202 = vmul.f32 %v187, %v194
    %v203 = vmul.f32 %v188, %v194
    %vm204 = vcmask 130048
    %v205 = vsel %vm204, %v196, 0.0
    %206 = vadd.xlane.f32.xlu0 %v205
    %v207 = vpop.xlane.xlu0 %206
    %v208 = vsel %vm204, %v197, 0.0
    %209 = vadd.xlane.f32.xlu0 %v208
    %v210 = vpop.xlane.xlu0 %209
    %v211 = vsel %vm204, %v198, 0.0
    %212 = vadd.xlane.f32.xlu0 %v211
    %v213 = vpop.xlane.xlu0 %212
    %v214 = vsel %vm204, %v199, 0.0
    %215 = vadd.xlane.f32.xlu0 %v214
    %v216 = vpop.xlane.xlu0 %215
    %v217 = vsel %vm204, %v200, 0.0
    %218 = vadd.xlane.f32.xlu0 %v217
    %v219 = vpop.xlane.xlu0 %218
    %v220 = vsel %vm204, %v201, 0.0
    %221 = vadd.xlane.f32.xlu0 %v220
    %v222 = vpop.xlane.xlu0 %221
    %v223 = vsel %vm204, %v202, 0.0
    %224 = vadd.xlane.f32.xlu0 %v223
    %v225 = vpop.xlane.xlu0 %224
    %v226 = vsel %vm204, %v203, 0.0
    %227 = vadd.xlane.f32.xlu0 %v226
    %v228 = vpop.xlane.xlu0 %227
    %v237 = vlaneseq
    %v238 = vand.u32 %v237, 127
    %v239 = vlaneseq
    %v240 = vshrl.u32 %v239, 7
    %v241 = vsub.s32 %v238, %v240
    %v242 = vrot.slane %v207, %v241
    %v243 = vlaneseq
    %v244 = vshrl.u32 %v243, 7
    %v245 = vsub.s32 %v238, %v244
    %v246 = vrot.slane %v210, %v245
    %v247 = vlaneseq
    %v248 = vshrl.u32 %v247, 7
    %v249 = vsub.s32 %v238, %v248
    %v250 = vrot.slane %v213, %v249
    %v251 = vlaneseq
    %v252 = vshrl.u32 %v251, 7
    %v253 = vsub.s32 %v238, %v252
    %v254 = vrot.slane %v216, %v253
    %v255 = vlaneseq
    %v256 = vshrl.u32 %v255, 7
    %v257 = vsub.s32 %v238, %v256
    %v258 = vrot.slane %v219, %v257
    %v259 = vlaneseq
    %v260 = vshrl.u32 %v259, 7
    %v261 = vsub.s32 %v238, %v260
    %v262 = vrot.slane %v222, %v261
    %v263 = vlaneseq
    %v264 = vshrl.u32 %v263, 7
    %v265 = vsub.s32 %v238, %v264
    %v266 = vrot.slane %v225, %v265
    %v267 = vlaneseq
    %v268 = vshrl.u32 %v267, 7
    %v269 = vsub.s32 %v238, %v268
    %v270 = vrot.slane %v228, %v269
    %vm271 = vcmask 1041409
    %v272 = vsel %vm271, %v246, %v242
    %vm273 = vcmask 1042434
    %v274 = vsel %vm273, %v250, %v272
    %vm275 = vcmask 1043459
    %v276 = vsel %vm275, %v254, %v274
    %vm277 = vcmask 1044484
    %v278 = vsel %vm277, %v258, %v276
    %vm279 = vcmask 1045509
    %v280 = vsel %vm279, %v262, %v278
    %vm281 = vcmask 1046534
    %v282 = vsel %vm281, %v266, %v280
    %vm283 = vcmask 1047559
    %v284 = vsel %vm283, %v270, %v282
    %vm286 = vcmask 64512
    %v287 = vsel %vm286, %v284, -inf
    %288 = vmax.xlane.f32.xlu0 %v287
    %v289 = vpop.xlane.xlu0 %288
    %v291 = vlaneseq
    %v292 = vshrl.u32 %v291, 7
    %v293 = vsub.s32 0, %v292
    %v294 = vrot.slane %v289, %v293
    %v295 = vlaneseq
    %v296 = vshrl.u32 %v295, 7
    %v297 = vsub.s32 1, %v296
    %v298 = vrot.slane %v289, %v297
    %v299 = vlaneseq
    %v300 = vshrl.u32 %v299, 7
    %v301 = vsub.s32 2, %v300
    %v302 = vrot.slane %v289, %v301
    %v303 = vlaneseq
    %v304 = vshrl.u32 %v303, 7
    %v305 = vsub.s32 3, %v304
    %v306 = vrot.slane %v289, %v305
    %v307 = vlaneseq
    %v308 = vshrl.u32 %v307, 7
    %v309 = vsub.s32 4, %v308
    %v310 = vrot.slane %v289, %v309
    %v311 = vlaneseq
    %v312 = vshrl.u32 %v311, 7
    %v313 = vsub.s32 5, %v312
    %v314 = vrot.slane %v289, %v313
    %v315 = vlaneseq
    %v316 = vshrl.u32 %v315, 7
    %v317 = vsub.s32 6, %v316
    %v318 = vrot.slane %v289, %v317
    %v319 = vlaneseq
    %v320 = vshrl.u32 %v319, 7
    %v321 = vsub.s32 7, %v320
    %v322 = vrot.slane %v289, %v321
    %v331 = vsub.f32 %v207, %v294
    %v332 = vsub.f32 %v210, %v298
    %v333 = vsub.f32 %v213, %v302
    %v334 = vsub.f32 %v216, %v306
    %v335 = vsub.f32 %v219, %v310
    %v336 = vsub.f32 %v222, %v314
    %v337 = vsub.f32 %v225, %v318
    %v338 = vsub.f32 %v228, %v322
    %v339 = vmul.f32 %v331, 1.442695
    %v340 = vpow.pop %v339
    %v341 = vmul.f32 %v332, 1.442695
    %v342 = vpow.pop %v341
    %v343 = vmul.f32 %v333, 1.442695
    %v344 = vpow.pop %v343
    %v345 = vmul.f32 %v334, 1.442695
    %v346 = vpow.pop %v345
    %v347 = vmul.f32 %v335, 1.442695
    %v348 = vpow.pop %v347
    %v349 = vmul.f32 %v336, 1.442695
    %v350 = vpow.pop %v349
    %v351 = vmul.f32 %v337, 1.442695
    %v352 = vpow.pop %v351
    %v353 = vmul.f32 %v338, 1.442695
    %v354 = vpow.pop %v353
    %363 = vset.pattern.permute.xlu0 0
    %364 = vperm.xlu0 %363, %v340
    %v365 = vpop.permute.xlu0 %364
    %366 = vset.pattern.permute.xlu0 0
    %367 = vperm.xlu0 %366, %v342
    %v368 = vpop.permute.xlu0 %367
    %369 = vset.pattern.permute.xlu0 0
    %370 = vperm.xlu0 %369, %v344
    %v371 = vpop.permute.xlu0 %370
    %372 = vset.pattern.permute.xlu0 0
    %373 = vperm.xlu0 %372, %v346
    %v374 = vpop.permute.xlu0 %373
    %375 = vset.pattern.permute.xlu0 0
    %376 = vperm.xlu0 %375, %v348
    %v377 = vpop.permute.xlu0 %376
    %378 = vset.pattern.permute.xlu0 0
    %379 = vperm.xlu0 %378, %v350
    %v380 = vpop.permute.xlu0 %379
    %381 = vset.pattern.permute.xlu0 0
    %382 = vperm.xlu0 %381, %v352
    %v383 = vpop.permute.xlu0 %382
    %384 = vset.pattern.permute.xlu0 0
    %385 = vperm.xlu0 %384, %v354
    %v386 = vpop.permute.xlu0 %385
    %v387 = vlaneseq
    %v388 = vshrl.u32 %v387, 7
    %v389 = vsub.s32 %v238, %v388
    %v390 = vrot.slane %v365, %v389
    %v391 = vlaneseq
    %v392 = vshrl.u32 %v391, 7
    %v393 = vsub.s32 %v238, %v392
    %v394 = vrot.slane %v368, %v393
    %v395 = vlaneseq
    %v396 = vshrl.u32 %v395, 7
    %v397 = vsub.s32 %v238, %v396
    %v398 = vrot.slane %v371, %v397
    %v399 = vlaneseq
    %v400 = vshrl.u32 %v399, 7
    %v401 = vsub.s32 %v238, %v400
    %v402 = vrot.slane %v374, %v401
    %v403 = vlaneseq
    %v404 = vshrl.u32 %v403, 7
    %v405 = vsub.s32 %v238, %v404
    %v406 = vrot.slane %v377, %v405
    %v407 = vlaneseq
    %v408 = vshrl.u32 %v407, 7
    %v409 = vsub.s32 %v238, %v408
    %v410 = vrot.slane %v380, %v409
    %v411 = vlaneseq
    %v412 = vshrl.u32 %v411, 7
    %v413 = vsub.s32 %v238, %v412
    %v414 = vrot.slane %v383, %v413
    %v415 = vlaneseq
    %v416 = vshrl.u32 %v415, 7
    %v417 = vsub.s32 %v238, %v416
    %v418 = vrot.slane %v386, %v417
    %v419 = vsel %vm271, %v394, %v390
    %v420 = vsel %vm273, %v398, %v419
    %v421 = vsel %vm275, %v402, %v420
    %v422 = vsel %vm277, %v406, %v421
    %v423 = vsel %vm279, %v410, %v422
    %v424 = vsel %vm281, %v414, %v423
    %v425 = vsel %vm283, %v418, %v424
    %v427 = vsel %vm286, %v425, 0.0
    %428 = vadd.xlane.f32.xlu0 %v427
    %v429 = vpop.xlane.xlu0 %428
    %v431 = vlaneseq
    %v432 = vshrl.u32 %v431, 7
    %v433 = vsub.s32 0, %v432
    %v434 = vrot.slane %v429, %v433
    %v435 = vlaneseq
    %v436 = vshrl.u32 %v435, 7
    %v437 = vsub.s32 1, %v436
    %v438 = vrot.slane %v429, %v437
    %v439 = vlaneseq
    %v440 = vshrl.u32 %v439, 7
    %v441 = vsub.s32 2, %v440
    %v442 = vrot.slane %v429, %v441
    %v443 = vlaneseq
    %v444 = vshrl.u32 %v443, 7
    %v445 = vsub.s32 3, %v444
    %v446 = vrot.slane %v429, %v445
    %v447 = vlaneseq
    %v448 = vshrl.u32 %v447, 7
    %v449 = vsub.s32 4, %v448
    %v450 = vrot.slane %v429, %v449
    %v451 = vlaneseq
    %v452 = vshrl.u32 %v451, 7
    %v453 = vsub.s32 5, %v452
    %v454 = vrot.slane %v429, %v453
    %v455 = vlaneseq
    %v456 = vshrl.u32 %v455, 7
    %v457 = vsub.s32 6, %v456
    %v458 = vrot.slane %v429, %v457
    %v459 = vlaneseq
    %v460 = vshrl.u32 %v459, 7
    %v461 = vsub.s32 7, %v460
    %v462 = vrot.slane %v429, %v461
    %v471 = vrcp.pop %v434
    %v472 = vmul.f32 %v340, %v471
    %v473 = vrcp.pop %v438
    %v474 = vmul.f32 %v342, %v473
    %v475 = vrcp.pop %v442
    %v476 = vmul.f32 %v344, %v475
    %v477 = vrcp.pop %v446
    %v478 = vmul.f32 %v346, %v477
    %v479 = vrcp.pop %v450
    %v480 = vmul.f32 %v348, %v479
    %v481 = vrcp.pop %v454
    %v482 = vmul.f32 %v350, %v481
    %v483 = vrcp.pop %v458
    %v484 = vmul.f32 %v352, %v483
    %v485 = vrcp.pop %v462
    %v486 = vmul.f32 %v354, %v485
    %488 = vset.pattern.permute.xlu0 0
    %489 = vperm.xlu0 %488, %v472
    %v490 = vpop.permute.xlu0 %489
    %493 = vset.pattern.permute.xlu0 0
    %494 = vperm.xlu0 %493, %v474
    %v495 = vpop.permute.xlu0 %494
    %498 = vset.pattern.permute.xlu0 0
    %499 = vperm.xlu0 %498, %v476
    %v500 = vpop.permute.xlu0 %499
    %503 = vset.pattern.permute.xlu0 0
    %504 = vperm.xlu0 %503, %v478
    %v505 = vpop.permute.xlu0 %504
    %508 = vset.pattern.permute.xlu0 0
    %509 = vperm.xlu0 %508, %v480
    %v510 = vpop.permute.xlu0 %509
    %513 = vset.pattern.permute.xlu0 0
    %514 = vperm.xlu0 %513, %v482
    %v515 = vpop.permute.xlu0 %514
    %518 = vset.pattern.permute.xlu0 0
    %519 = vperm.xlu0 %518, %v484
    %v520 = vpop.permute.xlu0 %519
    %523 = vset.pattern.permute.xlu0 0
    %524 = vperm.xlu0 %523, %v486
    %v525 = vpop.permute.xlu0 %524
    %v527 = vmul.f32 %v490, %v32
    %v528 = vmul.f32 %v495, %v33
    %v529 = vmul.f32 %v500, %v34
    %v530 = vmul.f32 %v505, %v35
    %v531 = vmul.f32 %v510, %v36
    %v532 = vmul.f32 %v515, %v37
    %v533 = vmul.f32 %v520, %v38
    %v534 = vmul.f32 %v525, %v39
    %v535 = vsel %vm51, %v527, 0.0
    %v536 = vrot.slane %v535, 4
    %v537 = vadd.f32 %v535, %v536
    %v538 = vrot.slane %v537, 2
    %v539 = vadd.f32 %v537, %v538
    %v540 = vrot.slane %v539, 1
    %v541 = vadd.f32 %v539, %v540
    %v542 = vsel %vm51, %v528, 0.0
    %v543 = vrot.slane %v542, 4
    %v544 = vadd.f32 %v542, %v543
    %v545 = vrot.slane %v544, 2
    %v546 = vadd.f32 %v544, %v545
    %v547 = vrot.slane %v546, 1
    %v548 = vadd.f32 %v546, %v547
    %v549 = vsel %vm51, %v529, 0.0
    %v550 = vrot.slane %v549, 4
    %v551 = vadd.f32 %v549, %v550
    %v552 = vrot.slane %v551, 2
    %v553 = vadd.f32 %v551, %v552
    %v554 = vrot.slane %v553, 1
    %v555 = vadd.f32 %v553, %v554
    %v556 = vsel %vm51, %v530, 0.0
    %v557 = vrot.slane %v556, 4
    %v558 = vadd.f32 %v556, %v557
    %v559 = vrot.slane %v558, 2
    %v560 = vadd.f32 %v558, %v559
    %v561 = vrot.slane %v560, 1
    %v562 = vadd.f32 %v560, %v561
    %v563 = vsel %vm51, %v531, 0.0
    %v564 = vrot.slane %v563, 4
    %v565 = vadd.f32 %v563, %v564
    %v566 = vrot.slane %v565, 2
    %v567 = vadd.f32 %v565, %v566
    %v568 = vrot.slane %v567, 1
    %v569 = vadd.f32 %v567, %v568
    %v570 = vsel %vm51, %v532, 0.0
    %v571 = vrot.slane %v570, 4
    %v572 = vadd.f32 %v570, %v571
    %v573 = vrot.slane %v572, 2
    %v574 = vadd.f32 %v572, %v573
    %v575 = vrot.slane %v574, 1
    %v576 = vadd.f32 %v574, %v575
    %v577 = vsel %vm51, %v533, 0.0
    %v578 = vrot.slane %v577, 4
    %v579 = vadd.f32 %v577, %v578
    %v580 = vrot.slane %v579, 2
    %v581 = vadd.f32 %v579, %v580
    %v582 = vrot.slane %v581, 1
    %v583 = vadd.f32 %v581, %v582
    %v584 = vsel %vm51, %v534, 0.0
    %v585 = vrot.slane %v584, 4
    %v586 = vadd.f32 %v584, %v585
    %v587 = vrot.slane %v586, 2
    %v588 = vadd.f32 %v586, %v587
    %v589 = vrot.slane %v588, 1
    %v590 = vadd.f32 %v588, %v589
    %v599 = vsel %vm271, %v548, %v541
    %v600 = vsel %vm273, %v555, %v599
    %v601 = vsel %vm275, %v562, %v600
    %v602 = vsel %vm277, %v569, %v601
    %v603 = vsel %vm279, %v576, %v602
    %v604 = vsel %vm281, %v583, %v603
    %v605 = vsel %vm283, %v590, %v604
    %607 = vst.msk [vmem:[#allocation5] sm:$0xff] %vm51, %v605
    // Predicated region
    $region22: #{tpu_custom_call.1} parent=1 // pred_check
      _
    $region23: #{tpu_custom_call.1} parent=1 // pred_check_branch
      %609 = sbr.rel (0) target = $region25
    $region24: #{tpu_custom_call.1} parent=1 // pred_region
      %s611 = ssub.s32 128, 128
      %612 = vsyncadd [#allocation4], %s611
      %s614 = sshll.u32 [#allocation5], 4
      %s615 = int_to_ptr.vmem [resolvable:$true] %s614
      %617 = dma.vmem_to_hbm [thread:$0]  %s615, 128, %s4, [#allocation4]
    $region25: #{tpu_custom_call.1} parent=1 // pred_fallthru
      _
    // Predicated region
    $region26: #{tpu_custom_call.1} parent=1 // pred_check
      _
    $region27: #{tpu_custom_call.1} parent=1 // pred_check_branch
      %619 = sbr.rel (0) target = $region29
    $region28: #{tpu_custom_call.1} parent=1 // pred_region
      %620 = dma.done [#allocation4], 128
    $region29: #{tpu_custom_call.1} parent=1 // pred_fallthru
      _
    %621 = vsyncpa [#allocation3], 1
    %622 = vsyncpa [#allocation4], 1

</llo_original>
